<compile_context>
chip_gen: v5e
topology: v5e:2x2
jax: 0.10.0
libtpu: 0.0.40
codegen_flags: <defaults>
</compile_context>

<pallas_src>
import functools

import jax
import jax.numpy as jnp
from jax import lax
from jax.experimental import pallas as pl
from jax.experimental.pallas import tpu as pltpu


def _round_up(x, m):
    return ((x + m - 1) // m) * m


def _triplet_kernel(anc_ref, pos_ref, neg_ref, out_ref, *,
                    margin, size_average, true_b, block_b, needs_mask):
    i = pl.program_id(0)

    @pl.when(i == 0)
    def _init():
        out_ref[...] = jnp.zeros_like(out_ref)

    anc = anc_ref[...]
    pos = pos_ref[...]
    neg = neg_ref[...]
    if anc.dtype != jnp.float32:  # only cast when needed (e.g. bf16 inputs)
        anc = anc.astype(jnp.float32)
        pos = pos.astype(jnp.float32)
        neg = neg.astype(jnp.float32)

    # d_ap - d_an == sum_D [(a-p)^2 - (a-n)^2] == sum_D (2a - p - n) * (n - p)
    diff = (2.0 * anc - pos - neg) * (neg - pos)
    d_gap = jnp.sum(diff, axis=1, keepdims=True)               # (TB, 1)
    loss = jnp.maximum(d_gap + jnp.float32(margin), 0.0)        # (TB, 1)

    if needs_mask:
        row = i * block_b + lax.broadcasted_iota(jnp.int32, loss.shape, 0)
        loss = jnp.where(row < true_b, loss, 0.0)

    out_ref[...] += jnp.sum(loss, keepdims=True)                # (1, 1)

    @pl.when(i == pl.num_programs(0) - 1)
    def _finalize():
        if size_average:
            out_ref[...] = out_ref[...] * jnp.float32(1.0 / true_b)


def triplet_loss(anc, pos, neg, *, margin=3.0, size_average=True, block_b=None):
    """Pallas equivalent of TripletLoss(margin).forward(anc, pos, neg, size_average)."""
    B, D = anc.shape
    assert pos.shape == (B, D) and neg.shape == (B, D), "shape mismatch"

    # Tile size from double-buffer VMEM budget: 3 inputs * 2 buffers * TB * D * bytes.
    itemsize = max(jnp.dtype(anc.dtype).itemsize, 4)
    budget_bytes = 12 * 1024 * 1024          # safe under v5e's 16 MiB scoped default
    tb_cap = max(8, (budget_bytes // (6 * D * itemsize)) // 8 * 8)
    if block_b is None:
        block_b = min(2048, tb_cap)
    tb = min(int(block_b), int(tb_cap), _round_up(B, 8))
    tb = max(8, _round_up(tb, 8))

    b_pad = _round_up(B, tb)
    if b_pad != B:
        pad = ((0, b_pad - B), (0, 0))
        anc = jnp.pad(anc, pad)
        pos = jnp.pad(pos, pad)
        neg = jnp.pad(neg, pad)
    num_tiles = b_pad // tb

    kernel = functools.partial(
        _triplet_kernel,
        margin=float(margin),
        size_average=bool(size_average),
        true_b=int(B),
        block_b=int(tb),
        needs_mask=(b_pad != B),
    )

    in_block = pl.BlockSpec((tb, D), lambda i: (i, 0))
    # TODO(synk): on v7x (2 TensorCores) emit per-tile partial sums on a
    # "parallel" batch axis instead of a single resident accumulator.
    out = pl.pallas_call(
        kernel,
        out_shape=jax.ShapeDtypeStruct((1, 1), jnp.float32),
        grid=(num_tiles,),
        in_specs=[in_block, in_block, in_block],
        out_specs=pl.BlockSpec((1, 1), lambda i: (0, 0)),
        compiler_params=pltpu.CompilerParams(
            dimension_semantics=("arbitrary",)),
    )(anc, pos, neg)
    return out[0, 0]


def _reference(anc, pos, neg, margin=3.0, size_average=True):
    anc = anc.astype(jnp.float32)
    pos = pos.astype(jnp.float32)
    neg = neg.astype(jnp.float32)
    d_ap = jnp.sum((anc - pos) ** 2, axis=1)
    d_an = jnp.sum((anc - neg) ** 2, axis=1)
    loss = jnp.maximum(d_ap - d_an + margin, 0.0)
    return jnp.mean(loss) if size_average else jnp.sum(loss)


if __name__ == "__main__":
    margin = 3.0
    print('Triplet Loss initialized with marigin {}.'.format(margin))

    key = jax.random.PRNGKey(0)

    def make(bs, d, dtype=jnp.float32):
        k_a, k_p, k_n = jax.random.split(jax.random.fold_in(key, bs), 3)
        return (jax.random.normal(k_a, (bs, d), dtype=dtype),
                jax.random.normal(k_p, (bs, d), dtype=dtype),
                jax.random.normal(k_n, (bs, d), dtype=dtype))

    # Case 1: single aligned tile (B=8, D=128).
    a, p, n = make(8, 128)
    out_mean = triplet_loss(a, p, n, margin=margin, size_average=True)
    out_sum = triplet_loss(a, p, n, margin=margin, size_average=False)
    jax.block_until_ready((out_mean, out_sum))
    assert jnp.allclose(out_mean, _reference(a, p, n, margin, True),
                        rtol=1e-4, atol=1e-4), (out_mean,)
    assert jnp.allclose(out_sum, _reference(a, p, n, margin, False),
                        rtol=1e-4, atol=1e-4), (out_sum,)

    # Case 2: multi-tile grid with masked non-divisible tail (B=20, TB=8 -> 3 tiles).
    a, p, n = make(20, 128)
    out_mean = triplet_loss(a, p, n, margin=margin, size_average=True, block_b=8)
    out_sum = triplet_loss(a, p, n, margin=margin, size_average=False, block_b=8)
    jax.block_until_ready((out_mean, out_sum))
    assert jnp.allclose(out_mean, _reference(a, p, n, margin, True),
                        rtol=1e-4, atol=1e-4), (out_mean,)
    assert jnp.allclose(out_sum, _reference(a, p, n, margin, False),
                        rtol=1e-4, atol=1e-4), (out_sum,)

    print("KERNEL_OK")
</pallas_src>

<mosaic_0001>
module attributes {stable_mosaic.version = 11 : i64} {
  func.func @_triplet_kernel(%arg0: i32, %arg1: memref<8x128xf32, #tpu.memory_space<vmem>>, %arg2: memref<8x128xf32, #tpu.memory_space<vmem>>, %arg3: memref<8x128xf32, #tpu.memory_space<vmem>>, %arg4: memref<1x1xf32, #tpu.memory_space<vmem>>) attributes {dimension_semantics = [#tpu.dimension_semantics<arbitrary>], iteration_bounds = array<i64: 1>, scalar_prefetch = 0 : i64, scratch_operands = 0 : i64, tpu.core_type = #tpu.core_type<tc>, window_params = [{transform_indices = @transform_0, window_bounds = array<i64: 8, 128>}, {transform_indices = @transform_1, window_bounds = array<i64: 8, 128>}, {transform_indices = @transform_2, window_bounds = array<i64: 8, 128>}, {pipeline_mode = #tpu.pipeline_mode<synchronous>, transform_indices = @transform_3, window_bounds = array<i64: 1, 1>}]} {
    %c0_i32 = arith.constant 0 : i32
    %0 = arith.cmpi eq, %arg0, %c0_i32 : i32
    %1 = arith.extui %0 : i1 to i32
    %c0_i32_0 = arith.constant 0 : i32
    %2 = arith.cmpi ne, %1, %c0_i32_0 : i32
    scf.if %2 {
      %cst_16 = arith.constant 0.000000e+00 : f32
      %29 = vector.broadcast %cst_16 : f32 to vector<1x1xf32>
      %c0_17 = arith.constant 0 : index
      %c0_18 = arith.constant 0 : index
      %30 = vector.load %arg4[%c0_17, %c0_18] : memref<1x1xf32, #tpu.memory_space<vmem>>, vector<1x1xf32>
      tpu.vector_store %arg4[%c0_17, %c0_18], %29 {strides = array<i32>} : memref<1x1xf32, #tpu.memory_space<vmem>>, vector<1x1xf32>,
    } else {
    }
    %c0 = arith.constant 0 : index
    %c0_1 = arith.constant 0 : index
    %3 = vector.load %arg1[%c0, %c0_1] : memref<8x128xf32, #tpu.memory_space<vmem>>, vector<8x128xf32>
    %c0_2 = arith.constant 0 : index
    %c0_3 = arith.constant 0 : index
    %4 = vector.load %arg2[%c0_2, %c0_3] : memref<8x128xf32, #tpu.memory_space<vmem>>, vector<8x128xf32>
    %c0_4 = arith.constant 0 : index
    %c0_5 = arith.constant 0 : index
    %5 = vector.load %arg3[%c0_4, %c0_5] : memref<8x128xf32, #tpu.memory_space<vmem>>, vector<8x128xf32>
    %cst = arith.constant 2.000000e+00 : f32
    %6 = vector.broadcast %cst : f32 to vector<8x128xf32>
    %7 = arith.mulf %6, %3 : vector<8x128xf32>
    %8 = arith.subf %7, %4 : vector<8x128xf32>
    %9 = arith.subf %8, %5 : vector<8x128xf32>
    %10 = arith.subf %5, %4 : vector<8x128xf32>
    %11 = arith.mulf %9, %10 : vector<8x128xf32>
    %cst_6 = arith.constant dense<0.000000e+00> : vector<8xf32>
    %12 = vector.multi_reduction <add>, %11, %cst_6 [1] : vector<8x128xf32> to vector<8xf32>
    %13 = vector.shape_cast %12 : vector<8xf32> to vector<8x1xf32>
    %cst_7 = arith.constant 3.000000e+00 : f32
    %14 = vector.broadcast %cst_7 : f32 to vector<8x1xf32>
    %15 = arith.addf %13, %14 : vector<8x1xf32>
    %cst_8 = arith.constant 0.000000e+00 : f32
    %16 = vector.broadcast %cst_8 : f32 to vector<8x1xf32>
    %17 = arith.maximumf %15, %16 : vector<8x1xf32>
    %c0_9 = arith.constant 0 : index
    %c0_10 = arith.constant 0 : index
    %18 = vector.load %arg4[%c0_9, %c0_10] : memref<1x1xf32, #tpu.memory_space<vmem>>, vector<1x1xf32>
    %19 = vector.shape_cast %17 : vector<8x1xf32> to vector<1x8x1xf32>
    %cst_11 = arith.constant dense<0.000000e+00> : vector<1xf32>
    %20 = vector.multi_reduction <add>, %19, %cst_11 [1, 2] : vector<1x8x1xf32> to vector<1xf32>
    %21 = vector.shape_cast %20 : vector<1xf32> to vector<1x1x1xf32>
    %22 = vector.extract %21[0, 0, 0] : f32 from vector<1x1x1xf32>
    %23 = vector.broadcast %22 : f32 to vector<1x1xf32>
    %24 = arith.addf %18, %23 : vector<1x1xf32>
    %c0_12 = arith.constant 0 : index
    %c0_13 = arith.constant 0 : index
    %25 = vector.load %arg4[%c0_12, %c0_13] : memref<1x1xf32, #tpu.memory_space<vmem>>, vector<1x1xf32>
    tpu.vector_store %arg4[%c0_12, %c0_13], %24 {strides = array<i32>} : memref<1x1xf32, #tpu.memory_space<vmem>>, vector<1x1xf32>,
    %c0_i32_14 = arith.constant 0 : i32
    %26 = arith.cmpi eq, %arg0, %c0_i32_14 : i32
    %27 = arith.extui %26 : i1 to i32
    %c0_i32_15 = arith.constant 0 : i32
    %28 = arith.cmpi ne, %27, %c0_i32_15 : i32
    scf.if %28 {
      %c0_16 = arith.constant 0 : index
      %c0_17 = arith.constant 0 : index
      %29 = vector.load %arg4[%c0_16, %c0_17] : memref<1x1xf32, #tpu.memory_space<vmem>>, vector<1x1xf32>
      %cst_18 = arith.constant 1.250000e-01 : f32
      %30 = vector.broadcast %cst_18 : f32 to vector<1x1xf32>
      %31 = arith.mulf %29, %30 : vector<1x1xf32>
      %c0_19 = arith.constant 0 : index
      %c0_20 = arith.constant 0 : index
      %32 = vector.load %arg4[%c0_19, %c0_20] : memref<1x1xf32, #tpu.memory_space<vmem>>, vector<1x1xf32>
      tpu.vector_store %arg4[%c0_19, %c0_20], %31 {strides = array<i32>} : memref<1x1xf32, #tpu.memory_space<vmem>>, vector<1x1xf32>,
    } else {
    }
    return
  }
  func.func @transform_0(%arg0: i32) -> (i32, i32) {
    %c0_i32 = arith.constant 0 : i32
    %c0_i32_0 = arith.constant 0 : i32
    return %arg0, %c0_i32 : i32, i32
  }
  func.func @transform_1(%arg0: i32) -> (i32, i32) {
    %c0_i32 = arith.constant 0 : i32
    %c0_i32_0 = arith.constant 0 : i32
    return %arg0, %c0_i32 : i32, i32
  }
  func.func @transform_2(%arg0: i32) -> (i32, i32) {
    %c0_i32 = arith.constant 0 : i32
    %c0_i32_0 = arith.constant 0 : i32
    return %arg0, %c0_i32 : i32, i32
  }
  func.func @transform_3(%arg0: i32) -> (i32, i32) {
    %c0_i32 = arith.constant 0 : i32
    %c0_i32_0 = arith.constant 0 : i32
    %c0_i32_1 = arith.constant 0 : i32
    return %c0_i32, %c0_i32_0 : i32, i32
  }
}

</mosaic_0001>

<llo_original>
// kernel: tpu_custom_call.1
$region0: #{tpu_custom_call.1}
  #allocation0 [shape = 'u32[]', space=smem, size = 0x4, offset = 0x4, fixed_abs, tag = 'smem constant byte address 0x4 - core index']
  #allocation1 [shape = 'u32[72,128]{1,0:T(1,128)}', space=vmem, size = 0x9000, scoped, tag = 'internal scratch']
  %s0 = inlined_call_operand.hbm [shape: f32[8,128], index: 0, kind: input, shape index: {}]
  %s1 = inlined_call_operand.hbm [shape: f32[8,128], index: 1, kind: input, shape index: {}]
  %s2 = inlined_call_operand.hbm [shape: f32[8,128], index: 2, kind: input, shape index: {}]
  %s3 = inlined_call_operand.hbm [shape: f32[1,1], index: 3, kind: output, shape index: {}]
  %s4 = sld [smem:[#allocation0]]
  $region42: #{tpu_custom_call.1} parent=0
    _
  %s6 = ssub.s32 1, %s4
  %s7 = scalar_select 0, %s6, %s4
  $region1: #{tpu_custom_call.1} parent=0
    #allocation2 [shape = 'u8[4096]{0}', space=vmem, size = 0x1000, scoped, tag = 'input window, operand 0, single buffered']
    #allocation3 [shape = 's32[1]{0}', space=sflag, size = 0x4, scoped, tag = 'scoped memory for tpu_custom_call.1']
    #allocation4 [shape = 's32[1]{0}', space=sflag, size = 0x4, scoped, tag = 'scoped memory for tpu_custom_call.1']
    #allocation5 [shape = 'u8[4096]{0}', space=vmem, size = 0x1000, scoped, tag = 'input window, operand 1, single buffered']
    #allocation6 [shape = 's32[1]{0}', space=sflag, size = 0x4, scoped, tag = 'scoped memory for tpu_custom_call.1']
    #allocation7 [shape = 'u8[4096]{0}', space=vmem, size = 0x1000, scoped, tag = 'input window, operand 2, single buffered']
    #allocation8 [shape = 'u8[512]{0}', space=vmem, size = 0x400, scoped, tag = 'output window, operand 0, single buffered']
    %8 = vsyncpa [#allocation3], 0
    %9 = vsyncpa [#allocation6], 0
    %10 = vsyncpa [#allocation4], 0
    // Predicated region
    $region2: #{tpu_custom_call.1} parent=1 // pred_check
      _
    $region3: #{tpu_custom_call.1} parent=1 // pred_check_branch
      %12 = sbr.rel (0) target = $region5
    $region4: #{tpu_custom_call.1} parent=1 // pred_region
      %14 = vsyncadd [#allocation3], 0
      %s16 = sshll.u32 %s0, 4
      %s17 = int_to_ptr.hbm [resolvable:$true] %s16
      %s18 = sshll.u32 [#allocation2], 4
      %s19 = int_to_ptr.vmem [resolvable:$true] %s18
      %21 = dma.hbm_to_vmem [thread:$0]  %s17, 128, %s19, [#allocation3]
    $region5: #{tpu_custom_call.1} parent=1 // pred_fallthru
      _
    // Predicated region
    $region6: #{tpu_custom_call.1} parent=1 // pred_check
      _
    $region7: #{tpu_custom_call.1} parent=1 // pred_check_branch
      %23 = sbr.rel (0) target = $region9
    $region8: #{tpu_custom_call.1} parent=1 // pred_region
      %25 = vsyncadd [#allocation6], 0
      %s27 = sshll.u32 %s1, 4
      %s28 = int_to_ptr.hbm [resolvable:$true] %s27
      %s29 = sshll.u32 [#allocation5], 4
      %s30 = int_to_ptr.vmem [resolvable:$true] %s29
      %32 = dma.hbm_to_vmem [thread:$0]  %s28, 128, %s30, [#allocation6]
    $region9: #{tpu_custom_call.1} parent=1 // pred_fallthru
      _
    // Predicated region
    $region10: #{tpu_custom_call.1} parent=1 // pred_check
      _
    $region11: #{tpu_custom_call.1} parent=1 // pred_check_branch
      %34 = sbr.rel (0) target = $region13
    $region12: #{tpu_custom_call.1} parent=1 // pred_region
      %36 = vsyncadd [#allocation6], 0
      %s38 = sshll.u32 %s2, 4
      %s39 = int_to_ptr.hbm [resolvable:$true] %s38
      %s40 = sshll.u32 [#allocation7], 4
      %s41 = int_to_ptr.vmem [resolvable:$true] %s40
      %43 = dma.hbm_to_vmem [thread:$0]  %s39, 128, %s41, [#allocation6]
    $region13: #{tpu_custom_call.1} parent=1 // pred_fallthru
      _
    // Predicated region
    $region14: #{tpu_custom_call.1} parent=1 // pred_check
      _
    $region15: #{tpu_custom_call.1} parent=1 // pred_check_branch
      %45 = sbr.rel (0) target = $region17
    $region16: #{tpu_custom_call.1} parent=1 // pred_region
      %47 = dma.done [#allocation3], 128
    $region17: #{tpu_custom_call.1} parent=1 // pred_fallthru
      _
    // Predicated region
    $region18: #{tpu_custom_call.1} parent=1 // pred_check
      _
    $region19: #{tpu_custom_call.1} parent=1 // pred_check_branch
      %49 = sbr.rel (0) target = $region21
    $region20: #{tpu_custom_call.1} parent=1 // pred_region
      %51 = dma.done [#allocation6], 128
    $region21: #{tpu_custom_call.1} parent=1 // pred_fallthru
      _
    // Predicated region
    $region22: #{tpu_custom_call.1} parent=1 // pred_check
      _
    $region23: #{tpu_custom_call.1} parent=1 // pred_check_branch
      %53 = sbr.rel (0) target = $region25
    $region24: #{tpu_custom_call.1} parent=1 // pred_region
      %55 = dma.done [#allocation6], 128
    $region25: #{tpu_custom_call.1} parent=1 // pred_fallthru
      _
    %p56 = scmp.eq.s32.totalorder 0, 0
    // Predicated region
    $region26: #{tpu_custom_call.1} parent=1 // pred_check
      %p57 = pneg %p56
    $region27: #{tpu_custom_call.1} parent=1 // pred_check_branch
      %59 = sbr.rel (%p57) target = $region29
    $region28: #{tpu_custom_call.1} parent=1 // pred_region
      %vm60 = vcmask 0
      %61 = vst.msk [vmem:[#allocation8] sm:$0x1] %vm60, 0.0
    $region29: #{tpu_custom_call.1} parent=1 // pred_fallthru
      _
    %v62 = vld [vmem:[#allocation2] sm:$0xff]
    %v63 = vld [vmem:[#allocation5] sm:$0xff]
    %v64 = vld [vmem:[#allocation7] sm:$0xff]
    %v65 = vmul.f32 %v62, 2.0
    %v66 = vsub.f32 %v65, %v63
    %v67 = vsub.f32 %v66, %v64
    %v68 = vsub.f32 %v64, %v63
    %v69 = vmul.f32 %v67, %v68
    %70 = vadd.xlane.f32.xlu0 %v69
    %v71 = vpop.xlane.xlu0 %70
    %v72 = vadd.f32 %v71, 3.0
    %v73 = vmax.f32 %v72, 0.0
    %v74 = vld [vmem:[#allocation8] sm:$0x1]
    %vm75 = vcmask 7168
    %v76 = vsel %vm75, %v73, 0.0
    %77 = vadd.xlane.f32.xlu0 %v76
    %v78 = vpop.xlane.xlu0 %77
    %v79 = vrot.slane %v78, 4
    %v80 = vadd.f32 %v78, %v79
    %v81 = vrot.slane %v80, 2
    %v82 = vadd.f32 %v80, %v81
    %v83 = vrot.slane %v82, 1
    %v84 = vadd.f32 %v82, %v83
    %s85 = vtos %v84
    %v86 = vstv %s85
    %v87 = vadd.f32 %v74, %v86
    %vm88 = vcmask 0
    %89 = vst.msk [vmem:[#allocation8] sm:$0x1] %vm88, %v87
    // Predicated region
    $region30: #{tpu_custom_call.1} parent=1 // pred_check
      %p90 = pneg %p56
    $region31: #{tpu_custom_call.1} parent=1 // pred_check_branch
      %92 = sbr.rel (%p90) target = $region33
    $region32: #{tpu_custom_call.1} parent=1 // pred_region
      %v93 = vld [vmem:[#allocation8] sm:$0x1]
      %v94 = vmul.f32 %v93, 0.125
      %95 = vst.msk [vmem:[#allocation8] sm:$0x1] %vm88, %v94
    $region33: #{tpu_custom_call.1} parent=1 // pred_fallthru
      _
    // Predicated region
    $region34: #{tpu_custom_call.1} parent=1 // pred_check
      _
    $region35: #{tpu_custom_call.1} parent=1 // pred_check_branch
      %97 = sbr.rel (0) target = $region37
    $region36: #{tpu_custom_call.1} parent=1 // pred_region
      %99 = vsyncadd [#allocation4], 0
      %s101 = sshll.u32 [#allocation8], 4
      %s102 = int_to_ptr.vmem [resolvable:$true] %s101
      %s103 = sshll.u32 %s3, 4
      %s104 = int_to_ptr.hbm [resolvable:$true] %s103
      %106 = dma.vmem_to_hbm [thread:$0]  %s102, 16, %s104, [#allocation4]
    $region37: #{tpu_custom_call.1} parent=1 // pred_fallthru
      _
    // Predicated region
    $region38: #{tpu_custom_call.1} parent=1 // pred_check
      _
    $region39: #{tpu_custom_call.1} parent=1 // pred_check_branch
      %108 = sbr.rel (0) target = $region41
    $region40: #{tpu_custom_call.1} parent=1 // pred_region
      %110 = dma.done [#allocation4], 16
    $region41: #{tpu_custom_call.1} parent=1 // pred_fallthru
      _
    %111 = vsyncpa [#allocation3], 1
    %112 = vsyncpa [#allocation6], 1
    %113 = vsyncpa [#allocation4], 1

</llo_original>
